<compile_context>
chip_gen: v5e
topology: v5e:2x2
jax: 0.10.0
libtpu: 0.0.40
codegen_flags: <defaults>
</compile_context>

<pallas_src>
import math
import functools

import jax
import jax.numpy as jnp
from jax.experimental import pallas as pl
from jax.experimental.pallas import tpu as pltpu


def _round_up(n, m):
    return ((n + m - 1) // m) * m


def _rff_kernel(x_ref, bt_ref, out_ref, *, mapping_size):
    # K = input_dim is tiny for typical RFF usage, so the MXU is near-idle;
    # one full-K dot per batch tile.  The binding work is cos/sin (EUP/VPU)
    # and the output writeback, so keep the output tile lane/sublane dense.
    z = jnp.dot(x_ref[...], bt_ref[...], preferred_element_type=jnp.float32)
    # Flat (tb, 2*M) tile, static contiguous halves -> unmasked vst
    # (biggest single lever per the perf review).
    out_ref[:, :mapping_size] = jnp.cos(z).astype(out_ref.dtype)
    out_ref[:, mapping_size:] = jnp.sin(z).astype(out_ref.dtype)


def prepare_rff_params(b):
    """One-time param prep: fold 2*pi into B and pre-transpose.

    b: (mapping_size, input_dim) -> returns (input_dim, mapping_size)."""
    return (2.0 * math.pi) * b.T


# VMEM budget used to size the batch tile.  Kept well under v7x's 64 MiB/TC
# so double-buffering + weights + compiler scratch always fit; v5e/v6e
# (128 MiB) simply get more headroom.
_VMEM_BUDGET_BYTES = 48 * 1024 * 1024


def _choose_batch_tile(batch, input_dim, mapping_size, block_batch, out_bytes):
    # Sublane granularity of the output tile (8 rows for f32, 16 for bf16).
    sub = max(8, 32 // out_bytes)
    tb = min(block_batch, _round_up(batch, sub))
    # Megacore (v7x): keep >= 2 grid steps when there is enough work so the
    # "parallel" batch axis can be sharded across both TensorCores.
    if batch >= 2 * sub:
        tb = min(tb, _round_up(pl.cdiv(batch, 2), sub))
    # VMEM sizing: 2x double-buffered output + 2x double-buffered input
    # + resident weights must fit the budget.  (For extreme mapping_size
    # this shrinks tb instead of tiling M -- no reduction over M needed.)
    w_bytes = 4 * input_dim * mapping_size
    per_row = 2 * (2 * mapping_size * out_bytes) + 2 * (input_dim * 4)
    tb_max = max(sub, ((_VMEM_BUDGET_BYTES - w_bytes) // per_row) // sub * sub)
    return max(sub, min(tb, tb_max))


@functools.partial(jax.jit, static_argnames=("block_batch", "out_dtype"))
def rff_forward(x, bt_scaled, *, block_batch=1024, out_dtype=jnp.float32):
    """x: (batch, input_dim) f32, bt_scaled: (input_dim, mapping_size) f32
    (from prepare_rff_params).  Returns (batch, 2*mapping_size), laid out
    exactly like torch.cat([cos(2*pi*x@B.T), sin(2*pi*x@B.T)], dim=1)."""
    batch, input_dim = x.shape
    _, mapping_size = bt_scaled.shape
    out_bytes = jnp.dtype(out_dtype).itemsize

    tb = _choose_batch_tile(batch, input_dim, mapping_size, block_batch, out_bytes)
    grid = (pl.cdiv(batch, tb),)
    # No explicit padding: Pallas clips the ragged last tile's DMAs, so we
    # avoid the post-call out[:batch] slice (an extra full pass over the
    # output on a writeback-bound kernel).

    cost = pl.CostEstimate(
        flops=2 * batch * mapping_size * input_dim,
        transcendentals=2 * batch * mapping_size,
        bytes_accessed=(4 * batch * input_dim
                        + 4 * input_dim * mapping_size
                        + out_bytes * 2 * batch * mapping_size),
    )

    kernel = functools.partial(_rff_kernel, mapping_size=mapping_size)

    out = pl.pallas_call(
        kernel,
        out_shape=jax.ShapeDtypeStruct((batch, 2 * mapping_size), out_dtype),
        grid_spec=pltpu.PrefetchScalarGridSpec(
            num_scalar_prefetch=0,
            grid=grid,
            in_specs=[
                # Batch-tiled activations (auto double-buffered).
                pl.BlockSpec((tb, input_dim), lambda i: (i, 0)),
                # Weights stay resident in VMEM across the whole grid.
                pl.BlockSpec((input_dim, mapping_size), lambda i: (0, 0)),
            ],
            # Flat, lane+sublane-dense output tile; matches torch.cat(dim=1)
            # directly, so no wrapper reshape is needed.
            out_specs=pl.BlockSpec((tb, 2 * mapping_size), lambda i: (i, 0)),
        ),
        compiler_params=pltpu.CompilerParams(
            # Independent batch tiles -> shard across TCs on v7x megacore.
            dimension_semantics=("parallel",),
            # Headroom below v7x's 64 MiB/TC physical VMEM.
            vmem_limit_bytes=_VMEM_BUDGET_BYTES,
        ),
        cost_estimate=cost,
    )(x, bt_scaled)

    return out


def rff_reference(x, b):
    z = 2.0 * math.pi * (x @ b.T)
    return jnp.concatenate([jnp.cos(z), jnp.sin(z)], axis=1)


if __name__ == "__main__":
    key = jax.random.PRNGKey(0)
    k_x, k_b, k_x2, k_b2, k_x3, k_b3 = jax.random.split(key, 6)

    # --- Small demo shapes consistent with the module ---
    batch, input_dim, mapping_size, scale = 8, 4, 32, 1.0
    B = scale * jax.random.normal(k_b, (mapping_size, input_dim), dtype=jnp.float32)
    x = jax.random.normal(k_x, (batch, input_dim), dtype=jnp.float32)

    Bt = prepare_rff_params(B)          # one-time prep (hoisted transpose + 2*pi)
    out = jax.block_until_ready(rff_forward(x, Bt))
    ref = rff_reference(x, B)
    assert out.shape == (batch, 2 * mapping_size), out.shape
    assert jnp.allclose(out, ref, atol=1e-5, rtol=1e-5), "mismatch (small)"

    # --- Ragged last tile (batch not a multiple of the batch tile) ---
    batch2, input_dim2, mapping_size2 = 200, 4, 160
    B2 = jax.random.normal(k_b2, (mapping_size2, input_dim2), dtype=jnp.float32)
    x2 = jax.random.normal(k_x2, (batch2, input_dim2), dtype=jnp.float32)
    Bt2 = prepare_rff_params(B2)
    out2 = jax.block_until_ready(rff_forward(x2, Bt2, block_batch=64))  # grid=(4,), ragged
    ref2 = rff_reference(x2, B2)
    assert out2.shape == (batch2, 2 * mapping_size2), out2.shape
    assert jnp.allclose(out2, ref2, atol=1e-5, rtol=1e-5), "mismatch (ragged)"

    # --- Aligned shapes (M % 128 == 0) + megacore tb cap -> grid=(2,) ---
    batch3, input_dim3, mapping_size3 = 256, 4, 128
    B3 = jax.random.normal(k_b3, (mapping_size3, input_dim3), dtype=jnp.float32)
    x3 = jax.random.normal(k_x3, (batch3, input_dim3), dtype=jnp.float32)
    Bt3 = prepare_rff_params(B3)
    out3 = jax.block_until_ready(rff_forward(x3, Bt3))
    ref3 = rff_reference(x3, B3)
    assert out3.shape == (batch3, 2 * mapping_size3), out3.shape
    assert jnp.allclose(out3, ref3, atol=1e-5, rtol=1e-5), "mismatch (aligned)"

    # --- Optional bf16 output path (halves writeback traffic on v5e) ---
    out_bf16 = jax.block_until_ready(
        rff_forward(x3, Bt3, out_dtype=jnp.bfloat16))
    assert out_bf16.dtype == jnp.bfloat16
    assert jnp.allclose(out_bf16.astype(jnp.float32), ref3, atol=2e-2), "mismatch (bf16)"

    print("KERNEL_OK")
</pallas_src>

<mosaic_0001>
module attributes {stable_mosaic.version = 11 : i64} {
  func.func @_rff_kernel(%arg0: i32, %arg1: memref<8x4xf32, #tpu.memory_space<vmem>>, %arg2: memref<4x32xf32, #tpu.memory_space<vmem>>, %arg3: memref<8x64xf32, #tpu.memory_space<vmem>>) attributes {dimension_semantics = [#tpu.dimension_semantics<parallel>], iteration_bounds = array<i64: 1>, scalar_prefetch = 0 : i64, scratch_operands = 0 : i64, tpu.core_type = #tpu.core_type<tc>, window_params = [{transform_indices = @transform_0, window_bounds = array<i64: 8, 4>}, {pipeline_mode = #tpu.pipeline_mode<synchronous>, transform_indices = @transform_1, window_bounds = array<i64: 4, 32>}, {transform_indices = @transform_2, window_bounds = array<i64: 8, 64>}]} {
    %c0 = arith.constant 0 : index
    %c0_0 = arith.constant 0 : index
    %0 = vector.load %arg1[%c0, %c0_0] : memref<8x4xf32, #tpu.memory_space<vmem>>, vector<8x4xf32>
    %c0_1 = arith.constant 0 : index
    %c0_2 = arith.constant 0 : index
    %1 = vector.load %arg2[%c0_1, %c0_2] : memref<4x32xf32, #tpu.memory_space<vmem>>, vector<4x32xf32>
    %cst = arith.constant dense<0.000000e+00> : vector<8x32xf32>
    %2 = tpu.matmul %0, %1, %cst {dimension_numbers = #tpu.dot_dimension_numbers<[1], [0], [0], [1], [0, 0, 1, 1], [], []>} : vector<8x4xf32>, vector<4x32xf32>, vector<8x32xf32> -> vector<8x32xf32>
    %3 = math.cos %2 : vector<8x32xf32>
    %c0_3 = arith.constant 0 : index
    %c0_4 = arith.constant 0 : index
    %4 = vector.load %arg3[%c0_3, %c0_4] : memref<8x64xf32, #tpu.memory_space<vmem>>, vector<8x32xf32>
    tpu.vector_store %arg3[%c0_3, %c0_4], %3 {strides = array<i32>} : memref<8x64xf32, #tpu.memory_space<vmem>>, vector<8x32xf32>,
    %5 = math.sin %2 : vector<8x32xf32>
    %c0_5 = arith.constant 0 : index
    %c32 = arith.constant 32 : index
    %6 = vector.load %arg3[%c0_5, %c32] : memref<8x64xf32, #tpu.memory_space<vmem>>, vector<8x32xf32>
    tpu.vector_store %arg3[%c0_5, %c32], %5 {strides = array<i32>} : memref<8x64xf32, #tpu.memory_space<vmem>>, vector<8x32xf32>,
    return
  }
  func.func @transform_0(%arg0: i32) -> (i32, i32) {
    %c0_i32 = arith.constant 0 : i32
    %c0_i32_0 = arith.constant 0 : i32
    return %arg0, %c0_i32 : i32, i32
  }
  func.func @transform_1(%arg0: i32) -> (i32, i32) {
    %c0_i32 = arith.constant 0 : i32
    %c0_i32_0 = arith.constant 0 : i32
    %c0_i32_1 = arith.constant 0 : i32
    return %c0_i32, %c0_i32_0 : i32, i32
  }
  func.func @transform_2(%arg0: i32) -> (i32, i32) {
    %c0_i32 = arith.constant 0 : i32
    %c0_i32_0 = arith.constant 0 : i32
    return %arg0, %c0_i32 : i32, i32
  }
}

</mosaic_0001>

<llo_original>
// kernel: rff_forward.1
$region0: #{rff_forward.1}
  #allocation0 [shape = 'u32[]', space=smem, size = 0x4, offset = 0x4, fixed_abs, tag = 'smem constant byte address 0x4 - core index']
  #allocation1 [shape = 'u32[72,128]{1,0:T(1,128)}', space=vmem, size = 0x9000, scoped, tag = 'internal scratch']
  %s0 = inlined_call_operand.vmem [shape: f32[8,4], index: 0, kind: input, shape index: {}]
  %s1 = inlined_call_operand.vmem [shape: f32[4,32], index: 1, kind: input, shape index: {}]
  %s2 = inlined_call_operand.hbm [shape: f32[8,64], index: 2, kind: output, shape index: {}]
  %s3 = sld [smem:[#allocation0]]
  $region18: #{rff_forward.1} parent=0
    _
  %s5 = ssub.s32 1, %s3
  %s6 = scalar_select 0, %s5, %s3
  $region1: #{rff_forward.1} parent=0
    #allocation2 [shape = 'u8[4096]{0}', space=vmem, size = 0x1000, scoped, tag = 'output window, operand 0, single buffered']
    #allocation3 [shape = 's32[1]{0}', space=sflag, size = 0x4, scoped, tag = 'scoped memory for rff_forward.1']
    %7 = vsyncpa [#allocation3], 0
    // Predicated region
    $region2: #{rff_forward.1} parent=1 // pred_check
      _
    $region3: #{rff_forward.1} parent=1 // pred_check_branch
      %9 = sbr.rel (0) target = $region5
    $region4: #{rff_forward.1} parent=1 // pred_region
      _
    $region5: #{rff_forward.1} parent=1 // pred_fallthru
      _
    // Predicated region
    $region6: #{rff_forward.1} parent=1 // pred_check
      _
    $region7: #{rff_forward.1} parent=1 // pred_check_branch
      %11 = sbr.rel (0) target = $region9
    $region8: #{rff_forward.1} parent=1 // pred_region
      _
    $region9: #{rff_forward.1} parent=1 // pred_fallthru
      _
    %v12 = vld [vmem:[%s0] sm:$0xff]
    %v13 = vld [vmem:[%s1] sm:$0xf]
    %vm14 = vcmask 31744
    %v16 = vsel %vm14, %v12, 0
    %vm18 = vcmask 1043456
    %v20 = vsel %vm18, %v13, 0
    %22 = vmatpush.msra.mxu0 0.0
    %23 = vmatpush.msra.mxu0 0.0
    %24 = vmatpush.msra.mxu0 0.0
    %25 = vmatpush.msra.mxu0 0.0
    %26 = vmatpush.msra.mxu0 0.0
    %27 = vmatpush.msra.mxu0 0.0
    %28 = vmatpush.msra.mxu0 0.0
    %29 = vmatpush.msra.mxu0 0.0
    %30 = vmatpush.msra.mxu0 0.0
    %31 = vmatpush.msra.mxu0 0.0
    %32 = vmatpush.msra.mxu0 0.0
    %33 = vmatpush.msra.mxu0 0.0
    %34 = vmatpush.msra.mxu0 0.0
    %35 = vmatpush.msra.mxu0 0.0
    %36 = vmatpush.msra.mxu0 0.0
    %37 = vmatpush.msra.mxu0 %v20
    %38 = vmatmul.f32.gmra.mxu0 %v16
    %v39 = vpop.f32.mrf.mxu0
    %v40 = vadd.f32 0.0, %v39
    %41 = vdwg.mxu0
    %v42 = vand.u32 2147483647, %v40
    %vm43 = vcmp.le.f32.partialorder %v42, 0.7853982
    %vm44 = vcmp.lt.s32.totalorder %v40, 0
    %v45 = vand.u32 %v40, 2139095040
    %v46 = vshrl.u32 %v45, 23
    %v47 = vsub.s32 %v46, 127
    %v48 = vand.u32 2147483647, %v40
    %v49 = vand.u32 %v48, 8388607
    %v50 = vor.u32 %v49, 8388608
    %v51 = vsub.s32 0, %v50
    %v52 = vadd.s32 %v47, 1
    %vm53 = vcmp.gt.s32.totalorder %v52, 0
    %v54 = vsel %vm53, %v52, 0
    %v55 = vshrl.u32 %v54, 5
    %v56 = vand.u32 %v54, 31
    %v57 = vsub.s32 32, %v56
    %v58 = vshrl.u32 683565275, %v57
    %v59 = vshll.u32 683565275, %v56
    %v60 = vshrl.u32 2475754826, %v57
    %v61 = vor.u32 %v59, %v60
    %v62 = vshll.u32 2475754826, %v56
    %v63 = vshrl.u32 2131351028, %v57
    %v64 = vor.u32 %v62, %v63
    %v65 = vshll.u32 2131351028, %v56
    %v66 = vshrl.u32 2102212464, %v57
    %v67 = vor.u32 %v65, %v66
    %v68 = vshll.u32 2102212464, %v56
    %v69 = vshrl.u32 920167782, %v57
    %v70 = vor.u32 %v68, %v69
    %v71 = vshll.u32 920167782, %v56
    %v72 = vshrl.u32 1326507024, %v57
    %v73 = vor.u32 %v71, %v72
    %vm74 = vcmp.lt.s32.totalorder %v55, 1
    %vm75 = vcmp.lt.s32.totalorder %v55, 2
    %vm76 = vcmp.lt.s32.totalorder %v55, 3
    %vm77 = vcmp.lt.s32.totalorder %v55, 4
    %v78 = vsel %vm74, %v58, %v61
    %v79 = vsel %vm77, %v67, 2102212464
    %v80 = vsel %vm76, %v64, %v79
    %v81 = vsel %vm75, %v78, %v80
    %v82 = vsel %vm74, %v61, %v64
    %v83 = vsel %vm77, %v70, 920167782
    %v84 = vsel %vm76, %v67, %v83
    %v85 = vsel %vm75, %v82, %v84
    %v86 = vsel %vm74, %v64, %v67
    %v87 = vsel %vm77, %v73, 1326507024
    %v88 = vsel %vm76, %v70, %v87
    %v89 = vsel %vm75, %v86, %v88
    %v90 = vshll.u32 %v50, 8
    %v91 = vand.u32 %v90, 65535
    %v92 = vshrl.u32 %v90, 16
    %v93 = vand.u32 %v89, 65535
    %v94 = vshrl.u32 %v89, 16
    %v95 = vmul.u32 %v91, %v93
    %v96 = vmul.u32 %v91, %v94
    %v97 = vmul.u32 %v92, %v93
    %v98 = vmul.u32 %v92, %v94
    %v99 = vshll.u32 %v96, 16
    %v100 = vshrl.u32 %v96, 16
    %v101 = vshll.u32 %v97, 16
    %v102 = vshrl.u32 %v97, 16
    %vm103 = vc.u32 %v95, %v99
    %v104 = vsel %vm103, 1, 0
    %v105 = vadd.s32 %v95, %v99
    %v106 = vadd.s32 %v98, %v104
    %vm107 = vc.u32 %v105, %v101
    %v108 = vsel %vm107, 1, 0
    %v109 = vadd.s32 %v105, %v101
    %v110 = vadd.s32 %v106, %v108
    %v111 = vadd.s32 %v110, %v100
    %v112 = vadd.s32 %v111, %v102
    %v113 = vand.u32 %v90, 65535
    %v114 = vshrl.u32 %v90, 16
    %v115 = vand.u32 %v85, 65535
    %v116 = vshrl.u32 %v85, 16
    %v117 = vmul.u32 %v113, %v115
    %v118 = vmul.u32 %v113, %v116
    %v119 = vmul.u32 %v114, %v115
    %v120 = vmul.u32 %v114, %v116
    %v121 = vshll.u32 %v118, 16
    %v122 = vshrl.u32 %v118, 16
    %v123 = vshll.u32 %v119, 16
    %v124 = vshrl.u32 %v119, 16
    %vm125 = vc.u32 %v117, %v121
    %v126 = vsel %vm125, 1, 0
    %v127 = vadd.s32 %v117, %v121
    %v128 = vadd.s32 %v120, %v126
    %vm129 = vc.u32 %v127, %v123
    %v130 = vsel %vm129, 1, 0
    %v131 = vadd.s32 %v127, %v123
    %v132 = vadd.s32 %v128, %v130
    %v133 = vadd.s32 %v132, %v122
    %v134 = vadd.s32 %v133, %v124
    %v135 = vmul.u32 %v90, %v81
    %v136 = vadd.s32 %v112, %v131
    %vm137 = vc.u32 %v112, %v131
    %v138 = vadd.s32 %v134, 1
    %v139 = vsel %vm137, %v138, %v134
    %v140 = vadd.s32 %v135, %v139
    %v141 = vadd.s32 %v140, 536870912
    %v142 = vshrl.u32 %v141, 30
    %v143 = vshll.u32 %v142, 30
    %v144 = vsub.s32 %v140, %v143
    %vm145 = vcmp.lt.s32.totalorder %v144, 0
    %v146 = vsub.s32 0, %v144
    %v147 = vsel %vm145, %v146, %v144
    %v148 = vclz %v147
    %v149 = vsub.s32 %v148, 2
    %vm150 = vcmp.gt.s32.totalorder 0, %v149
    %v151 = vsel %vm150, 0, %v149
    %v152 = vsub.s32 32, %v151
    %v153 = vshll.u32 %v144, %v151
    %v154 = vshrl.u32 %v136, %v152
    %v155 = vor.u32 %v153, %v154
    %v156 = vsub.s32 4294967266, %v151
    %v157 = vadd.s32 %v156, 127
    %v158 = vshll.u32 %v157, 23
    %v159 = vor.u32 4788187, %v158
    %v160 = vand.u32 2147483647, %v159
    %v162 = vcvt.s32.f32 %v155
    %v163 = vmul.f32 %v162, %v160
    %v164 = vxor.u32 %v163, 2147483648
    %v165 = vsel %vm44, %v164, %v163
    %v166 = vsub.s32 4, %v142
    %v167 = vsel %vm44, %v166, %v142
    %v168 = vsel %vm43, %v40, %v165
    %v169 = vsel %vm43, 0, %v167
    %v170 = vmul.f32 %v168, %v168
    %v171 = vmul.f32 %v170, -0.001358992
    %v172 = vadd.f32 %v171, 0.041655596
    %v173 = vmul.f32 %v170, %v172
    %v174 = vadd.f32 %v173, -0.4999988
    %v175 = vmul.f32 %v170, %v174
    %v176 = vadd.f32 1.0, %v175
    %v177 = vmul.f32 %v168, %v168
    %v178 = vmul.f32 %v177, -0.00019511016
    %v179 = vadd.f32 %v178, 0.008332121
    %v180 = vmul.f32 %v177, %v179
    %v181 = vadd.f32 %v180, -0.16666654
    %v182 = vmul.f32 %v177, %v181
    %v183 = vadd.f32 %v182, 1.0
    %v184 = vmul.f32 %v183, %v168
    %vm185 = vweird.f32 %v40
    %v186 = vand.u32 %v169, 3
    %vm187 = vcmp.lt.s32.totalorder %v186, 2
    %vm188 = vcmp.eq.s32.totalorder %v186, 0
    %v189 = vxor.u32 %v184, 2147483648
    %v190 = vsel %vm188, %v176, %v189
    %vm191 = vcmp.eq.s32.totalorder %v186, 2
    %v192 = vxor.u32 %v176, 2147483648
    %v193 = vsel %vm191, %v192, %v184
    %v194 = vsel %vm187, %v190, %v193
    %v195 = vsel %vm185, nan, %v194
    %vm196 = vcmask 261120
    %197 = vst.msk [vmem:[#allocation2] sm:$0xff] %vm196, %v195
    %v198 = vand.u32 2147483647, %v40
    %vm199 = vcmp.le.f32.partialorder %v198, 0.7853982
    %vm200 = vcmp.lt.s32.totalorder %v40, 0
    %v201 = vand.u32 %v40, 2139095040
    %v202 = vshrl.u32 %v201, 23
    %v203 = vsub.s32 %v202, 127
    %v204 = vand.u32 2147483647, %v40
    %v205 = vand.u32 %v204, 8388607
    %v206 = vor.u32 %v205, 8388608
    %v207 = vsub.s32 0, %v206
    %v208 = vadd.s32 %v203, 1
    %vm209 = vcmp.gt.s32.totalorder %v208, 0
    %v210 = vsel %vm209, %v208, 0
    %v211 = vshrl.u32 %v210, 5
    %v212 = vand.u32 %v210, 31
    %v213 = vsub.s32 32, %v212
    %v214 = vshrl.u32 683565275, %v213
    %v215 = vshll.u32 683565275, %v212
    %v216 = vshrl.u32 2475754826, %v213
    %v217 = vor.u32 %v215, %v216
    %v218 = vshll.u32 2475754826, %v212
    %v219 = vshrl.u32 2131351028, %v213
    %v220 = vor.u32 %v218, %v219
    %v221 = vshll.u32 2131351028, %v212
    %v222 = vshrl.u32 2102212464, %v213
    %v223 = vor.u32 %v221, %v222
    %v224 = vshll.u32 2102212464, %v212
    %v225 = vshrl.u32 920167782, %v213
    %v226 = vor.u32 %v224, %v225
    %v227 = vshll.u32 920167782, %v212
    %v228 = vshrl.u32 1326507024, %v213
    %v229 = vor.u32 %v227, %v228
    %vm230 = vcmp.lt.s32.totalorder %v211, 1
    %vm231 = vcmp.lt.s32.totalorder %v211, 2
    %vm232 = vcmp.lt.s32.totalorder %v211, 3
    %vm233 = vcmp.lt.s32.totalorder %v211, 4
    %v234 = vsel %vm230, %v214, %v217
    %v235 = vsel %vm233, %v223, 2102212464
    %v236 = vsel %vm232, %v220, %v235
    %v237 = vsel %vm231, %v234, %v236
    %v238 = vsel %vm230, %v217, %v220
    %v239 = vsel %vm233, %v226, 920167782
    %v240 = vsel %vm232, %v223, %v239
    %v241 = vsel %vm231, %v238, %v240
    %v242 = vsel %vm230, %v220, %v223
    %v243 = vsel %vm233, %v229, 1326507024
    %v244 = vsel %vm232, %v226, %v243
    %v245 = vsel %vm231, %v242, %v244
    %v246 = vshll.u32 %v206, 8
    %v247 = vand.u32 %v246, 65535
    %v248 = vshrl.u32 %v246, 16
    %v249 = vand.u32 %v245, 65535
    %v250 = vshrl.u32 %v245, 16
    %v251 = vmul.u32 %v247, %v249
    %v252 = vmul.u32 %v247, %v250
    %v253 = vmul.u32 %v248, %v249
    %v254 = vmul.u32 %v248, %v250
    %v255 = vshll.u32 %v252, 16
    %v256 = vshrl.u32 %v252, 16
    %v257 = vshll.u32 %v253, 16
    %v258 = vshrl.u32 %v253, 16
    %vm259 = vc.u32 %v251, %v255
    %v260 = vsel %vm259, 1, 0
    %v261 = vadd.s32 %v251, %v255
    %v262 = vadd.s32 %v254, %v260
    %vm263 = vc.u32 %v261, %v257
    %v264 = vsel %vm263, 1, 0
    %v265 = vadd.s32 %v261, %v257
    %v266 = vadd.s32 %v262, %v264
    %v267 = vadd.s32 %v266, %v256
    %v268 = vadd.s32 %v267, %v258
    %v269 = vand.u32 %v246, 65535
    %v270 = vshrl.u32 %v246, 16
    %v271 = vand.u32 %v241, 65535
    %v272 = vshrl.u32 %v241, 16
    %v273 = vmul.u32 %v269, %v271
    %v274 = vmul.u32 %v269, %v272
    %v275 = vmul.u32 %v270, %v271
    %v276 = vmul.u32 %v270, %v272
    %v277 = vshll.u32 %v274, 16
    %v278 = vshrl.u32 %v274, 16
    %v279 = vshll.u32 %v275, 16
    %v280 = vshrl.u32 %v275, 16
    %vm281 = vc.u32 %v273, %v277
    %v282 = vsel %vm281, 1, 0
    %v283 = vadd.s32 %v273, %v277
    %v284 = vadd.s32 %v276, %v282
    %vm285 = vc.u32 %v283, %v279
    %v286 = vsel %vm285, 1, 0
    %v287 = vadd.s32 %v283, %v279
    %v288 = vadd.s32 %v284, %v286
    %v289 = vadd.s32 %v288, %v278
    %v290 = vadd.s32 %v289, %v280
    %v291 = vmul.u32 %v246, %v237
    %v292 = vadd.s32 %v268, %v287
    %vm293 = vc.u32 %v268, %v287
    %v294 = vadd.s32 %v290, 1
    %v295 = vsel %vm293, %v294, %v290
    %v296 = vadd.s32 %v291, %v295
    %v297 = vadd.s32 %v296, 536870912
    %v298 = vshrl.u32 %v297, 30
    %v299 = vshll.u32 %v298, 30
    %v300 = vsub.s32 %v296, %v299
    %vm301 = vcmp.lt.s32.totalorder %v300, 0
    %v302 = vsub.s32 0, %v300
    %v303 = vsel %vm301, %v302, %v300
    %v304 = vclz %v303
    %v305 = vsub.s32 %v304, 2
    %vm306 = vcmp.gt.s32.totalorder 0, %v305
    %v307 = vsel %vm306, 0, %v305
    %v308 = vsub.s32 32, %v307
    %v309 = vshll.u32 %v300, %v307
    %v310 = vshrl.u32 %v292, %v308
    %v311 = vor.u32 %v309, %v310
    %v312 = vsub.s32 4294967266, %v307
    %v313 = vadd.s32 %v312, 127
    %v314 = vshll.u32 %v313, 23
    %v315 = vor.u32 4788187, %v314
    %v316 = vand.u32 2147483647, %v315
    %v318 = vcvt.s32.f32 %v311
    %v319 = vmul.f32 %v318, %v316
    %v320 = vxor.u32 %v319, 2147483648
    %v321 = vsel %vm200, %v320, %v319
    %v322 = vsub.s32 4, %v298
    %v323 = vsel %vm200, %v322, %v298
    %v324 = vsel %vm199, %v40, %v321
    %v325 = vsel %vm199, 0, %v323
    %v326 = vmul.f32 %v324, %v324
    %v327 = vmul.f32 %v326, -0.001358992
    %v328 = vadd.f32 %v327, 0.041655596
    %v329 = vmul.f32 %v326, %v328
    %v330 = vadd.f32 %v329, -0.4999988
    %v331 = vmul.f32 %v326, %v330
    %v332 = vadd.f32 1.0, %v331
    %v333 = vmul.f32 %v324, %v324
    %v334 = vmul.f32 %v333, -0.00019511016
    %v335 = vadd.f32 %v334, 0.008332121
    %v336 = vmul.f32 %v333, %v335
    %v337 = vadd.f32 %v336, -0.16666654
    %v338 = vmul.f32 %v333, %v337
    %v339 = vadd.f32 %v338, 1.0
    %v340 = vmul.f32 %v339, %v324
    %vm341 = vweird.f32 %v40
    %v342 = vadd.s32 %v325, 3
    %v343 = vand.u32 %v342, 3
    %vm344 = vcmp.lt.s32.totalorder %v343, 2
    %vm345 = vcmp.eq.s32.totalorder %v343, 0
    %v346 = vxor.u32 %v340, 2147483648
    %v347 = vsel %vm345, %v332, %v346
    %vm348 = vcmp.eq.s32.totalorder %v343, 2
    %v349 = vxor.u32 %v332, 2147483648
    %v350 = vsel %vm348, %v349, %v340
    %v351 = vsel %vm344, %v347, %v350
    %v352 = vsel %vm341, nan, %v351
    %354 = vrot.lane.b32.xlu0 %v352, 32
    %v355 = vpop.permute.xlu0 %354
    %vm357 = vcmask 523520
    %358 = vst.msk [vmem:[#allocation2] sm:$0xff] %vm357, %v355
    // Predicated region
    $region10: #{rff_forward.1} parent=1 // pred_check
      _
    $region11: #{rff_forward.1} parent=1 // pred_check_branch
      %360 = sbr.rel (0) target = $region13
    $region12: #{rff_forward.1} parent=1 // pred_region
      %362 = vsyncadd [#allocation3], 0
      %s364 = sshll.u32 [#allocation2], 4
      %s365 = int_to_ptr.vmem [resolvable:$true] %s364
      %s366 = sshll.u32 %s2, 4
      %s367 = int_to_ptr.hbm [resolvable:$true] %s366
      %369 = dma.vmem_to_hbm [thread:$0]  %s365, 128, %s367, [#allocation3]
    $region13: #{rff_forward.1} parent=1 // pred_fallthru
      _
    // Predicated region
    $region14: #{rff_forward.1} parent=1 // pred_check
      _
    $region15: #{rff_forward.1} parent=1 // pred_check_branch
      %371 = sbr.rel (0) target = $region17
    $region16: #{rff_forward.1} parent=1 // pred_region
      %373 = dma.done [#allocation3], 128
    $region17: #{rff_forward.1} parent=1 // pred_fallthru
      _
    %374 = vsyncpa [#allocation3], 1

</llo_original>
